<compile_context>
chip_gen: v5e
topology: v5e:2x2
jax: 0.10.0
libtpu: 0.0.40
codegen_flags: <defaults>
</compile_context>

<pallas_src>
import functools

import jax
import jax.numpy as jnp
from jax.experimental import pallas as pl
from jax.experimental.pallas import tpu as pltpu

IN_FEATURES = 28 * 28          # 784
K_PAD = 896                    # 7 * 128 (lane-aligned K)
HIDDEN = 32
OUT = 10
OUT_PAD = 128                  # lane-dense output width
DEFAULT_TB = 1024              # batch tile (rows) -- fits default scoped VMEM everywhere


def _round_up(x, m):
    return (x + m - 1) // m * m


def mlp_kernel(x_ref, w1_ref, b1_ref, w2_ref, b2_ref, o_ref):
    # x_ref : (TB, 896)   w1_ref: (896, 32)   b1_ref: (1, 32)   [f32 bias]
    # w2_ref: (32, 128)   b2_ref: (1, 128)    o_ref : (TB, 128)
    x = x_ref[...]
    h = jnp.dot(x, w1_ref[...], preferred_element_type=jnp.float32) + b1_ref[...]
    h = jnp.maximum(h, 0.0)                                   # ReLU on the VPU (f32)
    h = h.astype(w2_ref.dtype)
    out = jnp.dot(h, w2_ref[...], preferred_element_type=jnp.float32) + b2_ref[...]
    o_ref[...] = out.astype(o_ref.dtype)


@functools.partial(jax.jit, static_argnames=("tb", "compute_dtype"))
def student_model_forward(x_nchw, w1, b1, w2, b2, *, tb=DEFAULT_TB,
                          compute_dtype=jnp.float32):
    """x_nchw: (B, 1, 28, 28) -> logits (B, 10) float32.

    Weights are stored as (in_features, out_features), i.e. the transpose of
    PyTorch's nn.Linear layout, so the kernel computes plain x @ W + b.
    """
    B = x_nchw.shape[0]
    x_flat = x_nchw.reshape(B, -1).astype(compute_dtype)      # torch.flatten(x, 1)

    # Batch tile: multiple of 8 sublanes; shrink for tiny batches, pad B up to it.
    tb = min(tb, _round_up(B, 8))
    b_pad = _round_up(B, tb)

    # Zero-pad: batch -> b_pad, K 784 -> 896, output 10 -> 128 (lane-dense).
    x_p = jnp.zeros((b_pad, K_PAD), compute_dtype).at[:B, :IN_FEATURES].set(x_flat)
    w1_p = jnp.zeros((K_PAD, HIDDEN), compute_dtype).at[:IN_FEATURES, :].set(
        w1.astype(compute_dtype))
    w2_p = jnp.zeros((HIDDEN, OUT_PAD), compute_dtype).at[:, :OUT].set(
        w2.astype(compute_dtype))
    b1_p = b1.reshape(1, HIDDEN).astype(jnp.float32)
    b2_p = jnp.zeros((1, OUT_PAD), jnp.float32).at[0, :OUT].set(
        b2.astype(jnp.float32))

    const2d = lambda i: (0, 0)   # weights/biases stay resident across the grid

    out_padded = pl.pallas_call(
        mlp_kernel,
        out_shape=jax.ShapeDtypeStruct((b_pad, OUT_PAD), jnp.float32),
        grid=(b_pad // tb,),
        in_specs=[
            pl.BlockSpec((tb, K_PAD), lambda i: (i, 0)),       # x: streamed per tile
            pl.BlockSpec((K_PAD, HIDDEN), const2d),            # w1
            pl.BlockSpec((1, HIDDEN), const2d),                # b1
            pl.BlockSpec((HIDDEN, OUT_PAD), const2d),          # w2
            pl.BlockSpec((1, OUT_PAD), const2d),               # b2
        ],
        out_specs=pl.BlockSpec((tb, OUT_PAD), lambda i: (i, 0)),
        compiler_params=pltpu.CompilerParams(
            dimension_semantics=("parallel",),                 # megacore split on v7x
        ),
    )(x_p, w1_p, b1_p, w2_p, b2_p)

    return out_padded[:B, :OUT]


def init_params(key):
    """Deterministic init mirroring nn.Linear's uniform(-1/sqrt(fan_in)) bounds."""
    k1, k2, k3, k4 = jax.random.split(key, 4)
    bound1 = 1.0 / jnp.sqrt(IN_FEATURES)
    bound2 = 1.0 / jnp.sqrt(HIDDEN)
    # stored as (in, out): transpose of PyTorch's (out, in)
    w1 = jax.random.uniform(k1, (IN_FEATURES, HIDDEN), jnp.float32, -bound1, bound1)
    b1 = jax.random.uniform(k2, (HIDDEN,), jnp.float32, -bound1, bound1)
    w2 = jax.random.uniform(k3, (HIDDEN, OUT), jnp.float32, -bound2, bound2)
    b2 = jax.random.uniform(k4, (OUT,), jnp.float32, -bound2, bound2)
    return w1, b1, w2, b2


if __name__ == "__main__":
    key = jax.random.PRNGKey(0)
    k_x, k_p = jax.random.split(key)

    batch = 2
    x = jax.random.normal(k_x, (batch, 1, 28, 28), dtype=jnp.float32)
    w1, b1, w2, b2 = init_params(k_p)

    logits = student_model_forward(x, w1, b1, w2, b2)
    jax.block_until_ready(logits)

    # Pure-JAX reference check (f32 path).
    x_flat = x.reshape(batch, -1)
    ref = jnp.maximum(x_flat @ w1 + b1, 0.0) @ w2 + b2
    assert logits.shape == (batch, 10)
    assert jnp.allclose(logits, ref, atol=1e-5, rtol=1e-5)

    # Also exercise a multi-tile grid (non-multiple batch) to cover the
    # pipelined path with tail padding.
    big_b = 2080                                   # 2 full 1024-row tiles + tail pad
    xb = jax.random.normal(k_x, (big_b, 1, 28, 28), dtype=jnp.float32)
    logits_b = student_model_forward(xb, w1, b1, w2, b2)
    jax.block_until_ready(logits_b)
    ref_b = jnp.maximum(xb.reshape(big_b, -1) @ w1 + b1, 0.0) @ w2 + b2
    assert logits_b.shape == (big_b, 10)
    assert jnp.allclose(logits_b, ref_b, atol=1e-4, rtol=1e-4)

    print("KERNEL_OK")
</pallas_src>

<mosaic_0001>
module attributes {stable_mosaic.version = 11 : i64} {
  func.func @mlp_kernel(%arg0: i32, %arg1: memref<8x896xf32, #tpu.memory_space<vmem>>, %arg2: memref<896x32xf32, #tpu.memory_space<vmem>>, %arg3: memref<1x32xf32, #tpu.memory_space<vmem>>, %arg4: memref<32x128xf32, #tpu.memory_space<vmem>>, %arg5: memref<1x128xf32, #tpu.memory_space<vmem>>, %arg6: memref<8x128xf32, #tpu.memory_space<vmem>>) attributes {dimension_semantics = [#tpu.dimension_semantics<parallel>], iteration_bounds = array<i64: 1>, scalar_prefetch = 0 : i64, scratch_operands = 0 : i64, tpu.core_type = #tpu.core_type<tc>, window_params = [{transform_indices = @transform_0, window_bounds = array<i64: 8, 896>}, {pipeline_mode = #tpu.pipeline_mode<synchronous>, transform_indices = @transform_1, window_bounds = array<i64: 896, 32>}, {pipeline_mode = #tpu.pipeline_mode<synchronous>, transform_indices = @transform_2, window_bounds = array<i64: 1, 32>}, {pipeline_mode = #tpu.pipeline_mode<synchronous>, transform_indices = @transform_3, window_bounds = array<i64: 32, 128>}, {pipeline_mode = #tpu.pipeline_mode<synchronous>, transform_indices = @transform_4, window_bounds = array<i64: 1, 128>}, {transform_indices = @transform_5, window_bounds = array<i64: 8, 128>}]} {
    %c0 = arith.constant 0 : index
    %c0_0 = arith.constant 0 : index
    %0 = vector.load %arg1[%c0, %c0_0] : memref<8x896xf32, #tpu.memory_space<vmem>>, vector<8x896xf32>
    %c0_1 = arith.constant 0 : index
    %c0_2 = arith.constant 0 : index
    %1 = vector.load %arg2[%c0_1, %c0_2] : memref<896x32xf32, #tpu.memory_space<vmem>>, vector<896x32xf32>
    %cst = arith.constant dense<0.000000e+00> : vector<8x32xf32>
    %2 = tpu.matmul %0, %1, %cst {dimension_numbers = #tpu.dot_dimension_numbers<[1], [0], [0], [1], [0, 0, 1, 1], [], []>} : vector<8x896xf32>, vector<896x32xf32>, vector<8x32xf32> -> vector<8x32xf32>
    %c0_3 = arith.constant 0 : index
    %c0_4 = arith.constant 0 : index
    %3 = vector.load %arg3[%c0_3, %c0_4] : memref<1x32xf32, #tpu.memory_space<vmem>>, vector<1x32xf32>
    %4 = vector.broadcast %3 : vector<1x32xf32> to vector<8x32xf32>
    %5 = arith.addf %2, %4 : vector<8x32xf32>
    %cst_5 = arith.constant 0.000000e+00 : f32
    %6 = vector.broadcast %cst_5 : f32 to vector<8x32xf32>
    %7 = arith.maximumf %5, %6 : vector<8x32xf32>
    %c0_6 = arith.constant 0 : index
    %c0_7 = arith.constant 0 : index
    %8 = vector.load %arg4[%c0_6, %c0_7] : memref<32x128xf32, #tpu.memory_space<vmem>>, vector<32x128xf32>
    %cst_8 = arith.constant dense<0.000000e+00> : vector<8x128xf32>
    %9 = tpu.matmul %7, %8, %cst_8 {dimension_numbers = #tpu.dot_dimension_numbers<[1], [0], [0], [1], [0, 0, 1, 1], [], []>} : vector<8x32xf32>, vector<32x128xf32>, vector<8x128xf32> -> vector<8x128xf32>
    %c0_9 = arith.constant 0 : index
    %c0_10 = arith.constant 0 : index
    %10 = vector.load %arg5[%c0_9, %c0_10] : memref<1x128xf32, #tpu.memory_space<vmem>>, vector<1x128xf32>
    %11 = vector.broadcast %10 : vector<1x128xf32> to vector<8x128xf32>
    %12 = arith.addf %9, %11 : vector<8x128xf32>
    %c0_11 = arith.constant 0 : index
    %c0_12 = arith.constant 0 : index
    %13 = vector.load %arg6[%c0_11, %c0_12] : memref<8x128xf32, #tpu.memory_space<vmem>>, vector<8x128xf32>
    tpu.vector_store %arg6[%c0_11, %c0_12], %12 {strides = array<i32>} : memref<8x128xf32, #tpu.memory_space<vmem>>, vector<8x128xf32>,
    return
  }
  func.func @transform_0(%arg0: i32) -> (i32, i32) {
    %c0_i32 = arith.constant 0 : i32
    %c0_i32_0 = arith.constant 0 : i32
    return %arg0, %c0_i32 : i32, i32
  }
  func.func @transform_1(%arg0: i32) -> (i32, i32) {
    %c0_i32 = arith.constant 0 : i32
    %c0_i32_0 = arith.constant 0 : i32
    %c0_i32_1 = arith.constant 0 : i32
    return %c0_i32, %c0_i32_0 : i32, i32
  }
  func.func @transform_2(%arg0: i32) -> (i32, i32) {
    %c0_i32 = arith.constant 0 : i32
    %c0_i32_0 = arith.constant 0 : i32
    %c0_i32_1 = arith.constant 0 : i32
    return %c0_i32, %c0_i32_0 : i32, i32
  }
  func.func @transform_3(%arg0: i32) -> (i32, i32) {
    %c0_i32 = arith.constant 0 : i32
    %c0_i32_0 = arith.constant 0 : i32
    %c0_i32_1 = arith.constant 0 : i32
    return %c0_i32, %c0_i32_0 : i32, i32
  }
  func.func @transform_4(%arg0: i32) -> (i32, i32) {
    %c0_i32 = arith.constant 0 : i32
    %c0_i32_0 = arith.constant 0 : i32
    %c0_i32_1 = arith.constant 0 : i32
    return %c0_i32, %c0_i32_0 : i32, i32
  }
  func.func @transform_5(%arg0: i32) -> (i32, i32) {
    %c0_i32 = arith.constant 0 : i32
    %c0_i32_0 = arith.constant 0 : i32
    return %arg0, %c0_i32 : i32, i32
  }
}

</mosaic_0001>

<llo_original>
// kernel: student_model_forward.1
$region0: #{student_model_forward.1}
  #allocation0 [shape = 'u32[]', space=smem, size = 0x4, offset = 0x4, fixed_abs, tag = 'smem constant byte address 0x4 - core index']
  #allocation1 [shape = 'u32[72,128]{1,0:T(1,128)}', space=vmem, size = 0x9000, scoped, tag = 'internal scratch']
  %s0 = inlined_call_operand.vmem [shape: f32[8,896], index: 0, kind: input, shape index: {}]
  %s1 = inlined_call_operand.vmem [shape: f32[896,32], index: 1, kind: input, shape index: {}]
  %s2 = inlined_call_operand.vmem [shape: f32[1,32], index: 2, kind: input, shape index: {}]
  %s3 = inlined_call_operand.vmem [shape: f32[32,128], index: 3, kind: input, shape index: {}]
  %s4 = inlined_call_operand.vmem [shape: f32[1,128], index: 4, kind: input, shape index: {}]
  %s5 = inlined_call_operand.vmem [shape: f32[8,128], index: 5, kind: output, shape index: {}]
  %s6 = sld [smem:[#allocation0]]
  $region30: #{student_model_forward.1} parent=0
    _
  %s8 = ssub.s32 1, %s6
  %s9 = scalar_select 0, %s8, %s6
  // Predicated region
  $region2: #{student_model_forward.1} parent=0 // pred_check
    _
  $region3: #{student_model_forward.1} parent=0 // pred_check_branch
    %11 = sbr.rel (0) target = $region5
  $region4: #{student_model_forward.1} parent=0 // pred_region
    _
  $region5: #{student_model_forward.1} parent=0 // pred_fallthru
    _
  // Predicated region
  $region6: #{student_model_forward.1} parent=0 // pred_check
    _
  $region7: #{student_model_forward.1} parent=0 // pred_check_branch
    %13 = sbr.rel (0) target = $region9
  $region8: #{student_model_forward.1} parent=0 // pred_region
    _
  $region9: #{student_model_forward.1} parent=0 // pred_fallthru
    _
  // Predicated region
  $region10: #{student_model_forward.1} parent=0 // pred_check
    _
  $region11: #{student_model_forward.1} parent=0 // pred_check_branch
    %15 = sbr.rel (0) target = $region13
  $region12: #{student_model_forward.1} parent=0 // pred_region
    _
  $region13: #{student_model_forward.1} parent=0 // pred_fallthru
    _
  // Predicated region
  $region14: #{student_model_forward.1} parent=0 // pred_check
    _
  $region15: #{student_model_forward.1} parent=0 // pred_check_branch
    %17 = sbr.rel (0) target = $region17
  $region16: #{student_model_forward.1} parent=0 // pred_region
    _
  $region17: #{student_model_forward.1} parent=0 // pred_fallthru
    _
  // Predicated region
  $region18: #{student_model_forward.1} parent=0 // pred_check
    _
  $region19: #{student_model_forward.1} parent=0 // pred_check_branch
    %19 = sbr.rel (0) target = $region21
  $region20: #{student_model_forward.1} parent=0 // pred_region
    _
  $region21: #{student_model_forward.1} parent=0 // pred_fallthru
    _
  %v20 = vld [vmem:[%s0] sm:$0xff]
  %v21 = vld [vmem:[%s0 + $0x8] sm:$0xff]
  %v22 = vld [vmem:[%s0 + $0x10] sm:$0xff]
  %v23 = vld [vmem:[%s0 + $0x18] sm:$0xff]
  %v24 = vld [vmem:[%s0 + $0x20] sm:$0xff]
  %v25 = vld [vmem:[%s0 + $0x28] sm:$0xff]
  %v26 = vld [vmem:[%s0 + $0x30] sm:$0xff]
  %v27 = vld [vmem:[%s1] sm:$0xff]
  %v28 = vld [vmem:[%s1 + $0x8] sm:$0xff]
  %v29 = vld [vmem:[%s1 + $0x10] sm:$0xff]
  %v30 = vld [vmem:[%s1 + $0x18] sm:$0xff]
  %v31 = vld [vmem:[%s1 + $0x20] sm:$0xff]
  %v32 = vld [vmem:[%s1 + $0x28] sm:$0xff]
  %v33 = vld [vmem:[%s1 + $0x30] sm:$0xff]
  %v34 = vld [vmem:[%s1 + $0x38] sm:$0xff]
  %v35 = vld [vmem:[%s1 + $0x40] sm:$0xff]
  %v36 = vld [vmem:[%s1 + $0x48] sm:$0xff]
  %v37 = vld [vmem:[%s1 + $0x50] sm:$0xff]
  %v38 = vld [vmem:[%s1 + $0x58] sm:$0xff]
  %v39 = vld [vmem:[%s1 + $0x60] sm:$0xff]
  %v40 = vld [vmem:[%s1 + $0x68] sm:$0xff]
  %v41 = vld [vmem:[%s1 + $0x70] sm:$0xff]
  %v42 = vld [vmem:[%s1 + $0x78] sm:$0xff]
  %v43 = vld [vmem:[%s1 + $0x80] sm:$0xff]
  %v44 = vld [vmem:[%s1 + $0x88] sm:$0xff]
  %v45 = vld [vmem:[%s1 + $0x90] sm:$0xff]
  %v46 = vld [vmem:[%s1 + $0x98] sm:$0xff]
  %v47 = vld [vmem:[%s1 + $0xa0] sm:$0xff]
  %v48 = vld [vmem:[%s1 + $0xa8] sm:$0xff]
  %v49 = vld [vmem:[%s1 + $0xb0] sm:$0xff]
  %v50 = vld [vmem:[%s1 + $0xb8] sm:$0xff]
  %v51 = vld [vmem:[%s1 + $0xc0] sm:$0xff]
  %v52 = vld [vmem:[%s1 + $0xc8] sm:$0xff]
  %v53 = vld [vmem:[%s1 + $0xd0] sm:$0xff]
  %v54 = vld [vmem:[%s1 + $0xd8] sm:$0xff]
  %v55 = vld [vmem:[%s1 + $0xe0] sm:$0xff]
  %v56 = vld [vmem:[%s1 + $0xe8] sm:$0xff]
  %v57 = vld [vmem:[%s1 + $0xf0] sm:$0xff]
  %v58 = vld [vmem:[%s1 + $0xf8] sm:$0xff]
  %v59 = vld [vmem:[%s1 + $0x100] sm:$0xff]
  %v60 = vld [vmem:[%s1 + $0x108] sm:$0xff]
  %v61 = vld [vmem:[%s1 + $0x110] sm:$0xff]
  %v62 = vld [vmem:[%s1 + $0x118] sm:$0xff]
  %v63 = vld [vmem:[%s1 + $0x120] sm:$0xff]
  %v64 = vld [vmem:[%s1 + $0x128] sm:$0xff]
  %v65 = vld [vmem:[%s1 + $0x130] sm:$0xff]
  %v66 = vld [vmem:[%s1 + $0x138] sm:$0xff]
  %v67 = vld [vmem:[%s1 + $0x140] sm:$0xff]
  %v68 = vld [vmem:[%s1 + $0x148] sm:$0xff]
  %v69 = vld [vmem:[%s1 + $0x150] sm:$0xff]
  %v70 = vld [vmem:[%s1 + $0x158] sm:$0xff]
  %v71 = vld [vmem:[%s1 + $0x160] sm:$0xff]
  %v72 = vld [vmem:[%s1 + $0x168] sm:$0xff]
  %v73 = vld [vmem:[%s1 + $0x170] sm:$0xff]
  %v74 = vld [vmem:[%s1 + $0x178] sm:$0xff]
  %v75 = vld [vmem:[%s1 + $0x180] sm:$0xff]
  %v76 = vld [vmem:[%s1 + $0x188] sm:$0xff]
  %v77 = vld [vmem:[%s1 + $0x190] sm:$0xff]
  %v78 = vld [vmem:[%s1 + $0x198] sm:$0xff]
  %v79 = vld [vmem:[%s1 + $0x1a0] sm:$0xff]
  %v80 = vld [vmem:[%s1 + $0x1a8] sm:$0xff]
  %v81 = vld [vmem:[%s1 + $0x1b0] sm:$0xff]
  %v82 = vld [vmem:[%s1 + $0x1b8] sm:$0xff]
  %v83 = vld [vmem:[%s1 + $0x1c0] sm:$0xff]
  %v84 = vld [vmem:[%s1 + $0x1c8] sm:$0xff]
  %v85 = vld [vmem:[%s1 + $0x1d0] sm:$0xff]
  %v86 = vld [vmem:[%s1 + $0x1d8] sm:$0xff]
  %v87 = vld [vmem:[%s1 + $0x1e0] sm:$0xff]
  %v88 = vld [vmem:[%s1 + $0x1e8] sm:$0xff]
  %v89 = vld [vmem:[%s1 + $0x1f0] sm:$0xff]
  %v90 = vld [vmem:[%s1 + $0x1f8] sm:$0xff]
  %v91 = vld [vmem:[%s1 + $0x200] sm:$0xff]
  %v92 = vld [vmem:[%s1 + $0x208] sm:$0xff]
  %v93 = vld [vmem:[%s1 + $0x210] sm:$0xff]
  %v94 = vld [vmem:[%s1 + $0x218] sm:$0xff]
  %v95 = vld [vmem:[%s1 + $0x220] sm:$0xff]
  %v96 = vld [vmem:[%s1 + $0x228] sm:$0xff]
  %v97 = vld [vmem:[%s1 + $0x230] sm:$0xff]
  %v98 = vld [vmem:[%s1 + $0x238] sm:$0xff]
  %v99 = vld [vmem:[%s1 + $0x240] sm:$0xff]
  %v100 = vld [vmem:[%s1 + $0x248] sm:$0xff]
  %v101 = vld [vmem:[%s1 + $0x250] sm:$0xff]
  %v102 = vld [vmem:[%s1 + $0x258] sm:$0xff]
  %v103 = vld [vmem:[%s1 + $0x260] sm:$0xff]
  %v104 = vld [vmem:[%s1 + $0x268] sm:$0xff]
  %v105 = vld [vmem:[%s1 + $0x270] sm:$0xff]
  %v106 = vld [vmem:[%s1 + $0x278] sm:$0xff]
  %v107 = vld [vmem:[%s1 + $0x280] sm:$0xff]
  %v108 = vld [vmem:[%s1 + $0x288] sm:$0xff]
  %v109 = vld [vmem:[%s1 + $0x290] sm:$0xff]
  %v110 = vld [vmem:[%s1 + $0x298] sm:$0xff]
  %v111 = vld [vmem:[%s1 + $0x2a0] sm:$0xff]
  %v112 = vld [vmem:[%s1 + $0x2a8] sm:$0xff]
  %v113 = vld [vmem:[%s1 + $0x2b0] sm:$0xff]
  %v114 = vld [vmem:[%s1 + $0x2b8] sm:$0xff]
  %v115 = vld [vmem:[%s1 + $0x2c0] sm:$0xff]
  %v116 = vld [vmem:[%s1 + $0x2c8] sm:$0xff]
  %v117 = vld [vmem:[%s1 + $0x2d0] sm:$0xff]
  %v118 = vld [vmem:[%s1 + $0x2d8] sm:$0xff]
  %v119 = vld [vmem:[%s1 + $0x2e0] sm:$0xff]
  %v120 = vld [vmem:[%s1 + $0x2e8] sm:$0xff]
  %v121 = vld [vmem:[%s1 + $0x2f0] sm:$0xff]
  %v122 = vld [vmem:[%s1 + $0x2f8] sm:$0xff]
  %v123 = vld [vmem:[%s1 + $0x300] sm:$0xff]
  %v124 = vld [vmem:[%s1 + $0x308] sm:$0xff]
  %v125 = vld [vmem:[%s1 + $0x310] sm:$0xff]
  %v126 = vld [vmem:[%s1 + $0x318] sm:$0xff]
  %v127 = vld [vmem:[%s1 + $0x320] sm:$0xff]
  %v128 = vld [vmem:[%s1 + $0x328] sm:$0xff]
  %v129 = vld [vmem:[%s1 + $0x330] sm:$0xff]
  %v130 = vld [vmem:[%s1 + $0x338] sm:$0xff]
  %v131 = vld [vmem:[%s1 + $0x340] sm:$0xff]
  %v132 = vld [vmem:[%s1 + $0x348] sm:$0xff]
  %v133 = vld [vmem:[%s1 + $0x350] sm:$0xff]
  %v134 = vld [vmem:[%s1 + $0x358] sm:$0xff]
  %v135 = vld [vmem:[%s1 + $0x360] sm:$0xff]
  %v136 = vld [vmem:[%s1 + $0x368] sm:$0xff]
  %v137 = vld [vmem:[%s1 + $0x370] sm:$0xff]
  %v138 = vld [vmem:[%s1 + $0x378] sm:$0xff]
  %v139 = vld [vmem:[%s2] sm:$0x1]
  %v141 = vperm.slane %v139, 0
  %143 = vmatpush.msra.mxu0 %v42
  %144 = vmatpush.msra.mxu0 %v41
  %145 = vmatpush.msra.mxu0 %v40
  %146 = vmatpush.msra.mxu0 %v39
  %147 = vmatpush.msra.mxu0 %v38
  %148 = vmatpush.msra.mxu0 %v37
  %149 = vmatpush.msra.mxu0 %v36
  %150 = vmatpush.msra.mxu0 %v35
  %151 = vmatpush.msra.mxu0 %v34
  %152 = vmatpush.msra.mxu0 %v33
  %153 = vmatpush.msra.mxu0 %v32
  %154 = vmatpush.msra.mxu0 %v31
  %155 = vmatpush.msra.mxu0 %v30
  %156 = vmatpush.msra.mxu0 %v29
  %157 = vmatpush.msra.mxu0 %v28
  %158 = vmatpush.msra.mxu0 %v27
  %159 = vmatmul.f32.gmra.mxu0 %v20
  %v160 = vpop.f32.mrf.mxu0
  %v161 = vadd.f32 %v141, %v160
  %162 = vdwg.mxu0
  %163 = vmatpush.msra.mxu0 %v58
  %164 = vmatpush.msra.mxu0 %v57
  %165 = vmatpush.msra.mxu0 %v56
  %166 = vmatpush.msra.mxu0 %v55
  %167 = vmatpush.msra.mxu0 %v54
  %168 = vmatpush.msra.mxu0 %v53
  %169 = vmatpush.msra.mxu0 %v52
  %170 = vmatpush.msra.mxu0 %v51
  %171 = vmatpush.msra.mxu0 %v50
  %172 = vmatpush.msra.mxu0 %v49
  %173 = vmatpush.msra.mxu0 %v48
  %174 = vmatpush.msra.mxu0 %v47
  %175 = vmatpush.msra.mxu0 %v46
  %176 = vmatpush.msra.mxu0 %v45
  %177 = vmatpush.msra.mxu0 %v44
  %178 = vmatpush.msra.mxu0 %v43
  %179 = vmatmul.f32.gmra.mxu0 %v21
  %v180 = vpop.f32.mrf.mxu0
  %v181 = vadd.f32 %v161, %v180
  %182 = vdwg.mxu0
  %183 = vmatpush.msra.mxu0 %v74
  %184 = vmatpush.msra.mxu0 %v73
  %185 = vmatpush.msra.mxu0 %v72
  %186 = vmatpush.msra.mxu0 %v71
  %187 = vmatpush.msra.mxu0 %v70
  %188 = vmatpush.msra.mxu0 %v69
  %189 = vmatpush.msra.mxu0 %v68
  %190 = vmatpush.msra.mxu0 %v67
  %191 = vmatpush.msra.mxu0 %v66
  %192 = vmatpush.msra.mxu0 %v65
  %193 = vmatpush.msra.mxu0 %v64
  %194 = vmatpush.msra.mxu0 %v63
  %195 = vmatpush.msra.mxu0 %v62
  %196 = vmatpush.msra.mxu0 %v61
  %197 = vmatpush.msra.mxu0 %v60
  %198 = vmatpush.msra.mxu0 %v59
  %199 = vmatmul.f32.gmra.mxu0 %v22
  %v200 = vpop.f32.mrf.mxu0
  %v201 = vadd.f32 %v181, %v200
  %202 = vdwg.mxu0
  %203 = vmatpush.msra.mxu0 %v90
  %204 = vmatpush.msra.mxu0 %v89
  %205 = vmatpush.msra.mxu0 %v88
  %206 = vmatpush.msra.mxu0 %v87
  %207 = vmatpush.msra.mxu0 %v86
  %208 = vmatpush.msra.mxu0 %v85
  %209 = vmatpush.msra.mxu0 %v84
  %210 = vmatpush.msra.mxu0 %v83
  %211 = vmatpush.msra.mxu0 %v82
  %212 = vmatpush.msra.mxu0 %v81
  %213 = vmatpush.msra.mxu0 %v80
  %214 = vmatpush.msra.mxu0 %v79
  %215 = vmatpush.msra.mxu0 %v78
  %216 = vmatpush.msra.mxu0 %v77
  %217 = vmatpush.msra.mxu0 %v76
  %218 = vmatpush.msra.mxu0 %v75
  %219 = vmatmul.f32.gmra.mxu0 %v23
  %v220 = vpop.f32.mrf.mxu0
  %v221 = vadd.f32 %v201, %v220
  %222 = vdwg.mxu0
  %223 = vmatpush.msra.mxu0 %v106
  %224 = vmatpush.msra.mxu0 %v105
  %225 = vmatpush.msra.mxu0 %v104
  %226 = vmatpush.msra.mxu0 %v103
  %227 = vmatpush.msra.mxu0 %v102
  %228 = vmatpush.msra.mxu0 %v101
  %229 = vmatpush.msra.mxu0 %v100
  %230 = vmatpush.msra.mxu0 %v99
  %231 = vmatpush.msra.mxu0 %v98
  %232 = vmatpush.msra.mxu0 %v97
  %233 = vmatpush.msra.mxu0 %v96
  %234 = vmatpush.msra.mxu0 %v95
  %235 = vmatpush.msra.mxu0 %v94
  %236 = vmatpush.msra.mxu0 %v93
  %237 = vmatpush.msra.mxu0 %v92
  %238 = vmatpush.msra.mxu0 %v91
  %239 = vmatmul.f32.gmra.mxu0 %v24
  %v240 = vpop.f32.mrf.mxu0
  %v241 = vadd.f32 %v221, %v240
  %242 = vdwg.mxu0
  %243 = vmatpush.msra.mxu0 %v122
  %244 = vmatpush.msra.mxu0 %v121
  %245 = vmatpush.msra.mxu0 %v120
  %246 = vmatpush.msra.mxu0 %v119
  %247 = vmatpush.msra.mxu0 %v118
  %248 = vmatpush.msra.mxu0 %v117
  %249 = vmatpush.msra.mxu0 %v116
  %250 = vmatpush.msra.mxu0 %v115
  %251 = vmatpush.msra.mxu0 %v114
  %252 = vmatpush.msra.mxu0 %v113
  %253 = vmatpush.msra.mxu0 %v112
  %254 = vmatpush.msra.mxu0 %v111
  %255 = vmatpush.msra.mxu0 %v110
  %256 = vmatpush.msra.mxu0 %v109
  %257 = vmatpush.msra.mxu0 %v108
  %258 = vmatpush.msra.mxu0 %v107
  %259 = vmatmul.f32.gmra.mxu0 %v25
  %v260 = vpop.f32.mrf.mxu0
  %v261 = vadd.f32 %v241, %v260
  %262 = vdwg.mxu0
  %263 = vmatpush.msra.mxu0 %v138
  %264 = vmatpush.msra.mxu0 %v137
  %265 = vmatpush.msra.mxu0 %v136
  %266 = vmatpush.msra.mxu0 %v135
  %267 = vmatpush.msra.mxu0 %v134
  %268 = vmatpush.msra.mxu0 %v133
  %269 = vmatpush.msra.mxu0 %v132
  %270 = vmatpush.msra.mxu0 %v131
  %271 = vmatpush.msra.mxu0 %v130
  %272 = vmatpush.msra.mxu0 %v129
  %273 = vmatpush.msra.mxu0 %v128
  %274 = vmatpush.msra.mxu0 %v127
  %275 = vmatpush.msra.mxu0 %v126
  %276 = vmatpush.msra.mxu0 %v125
  %277 = vmatpush.msra.mxu0 %v124
  %278 = vmatpush.msra.mxu0 %v123
  %279 = vmatmul.f32.gmra.mxu0 %v26
  %v280 = vpop.f32.mrf.mxu0
  %v281 = vadd.f32 %v261, %v280
  %282 = vdwg.mxu0
  %v283 = vmax.f32 %v281, 0.0
  %v284 = vld [vmem:[%s3] sm:$0xff]
  %v285 = vld [vmem:[%s3 + $0x8] sm:$0xff]
  %v286 = vld [vmem:[%s3 + $0x10] sm:$0xff]
  %v287 = vld [vmem:[%s3 + $0x18] sm:$0xff]
  %v288 = vld [vmem:[%s4] sm:$0x1]
  %v290 = vperm.slane %v288, 0
  %vm292 = vcmask 261120
  %v294 = vsel %vm292, %v283, 0
  %296 = vmatpush.msra.mxu0 0.0
  %297 = vmatpush.msra.mxu0 0.0
  %298 = vmatpush.msra.mxu0 0.0
  %299 = vmatpush.msra.mxu0 0.0
  %300 = vmatpush.msra.mxu0 0.0
  %301 = vmatpush.msra.mxu0 0.0
  %302 = vmatpush.msra.mxu0 0.0
  %303 = vmatpush.msra.mxu0 0.0
  %304 = vmatpush.msra.mxu0 0.0
  %305 = vmatpush.msra.mxu0 0.0
  %306 = vmatpush.msra.mxu0 0.0
  %307 = vmatpush.msra.mxu0 0.0
  %308 = vmatpush.msra.mxu0 %v287
  %309 = vmatpush.msra.mxu0 %v286
  %310 = vmatpush.msra.mxu0 %v285
  %311 = vmatpush.msra.mxu0 %v284
  %312 = vmatmul.f32.gmra.mxu0 %v294
  %v313 = vpop.f32.mrf.mxu0
  %v314 = vadd.f32 %v290, %v313
  %315 = vdwg.mxu0
  %316 = vst [vmem:[%s5] sm:$0xff] %v314
  // Predicated region
  $region22: #{student_model_forward.1} parent=0 // pred_check
    _
  $region23: #{student_model_forward.1} parent=0 // pred_check_branch
    %318 = sbr.rel (0) target = $region25
  $region24: #{student_model_forward.1} parent=0 // pred_region
    _
  $region25: #{student_model_forward.1} parent=0 // pred_fallthru
    _
  // Predicated region
  $region26: #{student_model_forward.1} parent=0 // pred_check
    _
  $region27: #{student_model_forward.1} parent=0 // pred_check_branch
    %320 = sbr.rel (0) target = $region29
  $region28: #{student_model_forward.1} parent=0 // pred_region
    _
  $region29: #{student_model_forward.1} parent=0 // pred_fallthru
    _

</llo_original>
